<compile_context>
chip_gen: v7x
topology: tpu7x:2x2x1
jax: 0.10.0
libtpu: 0.0.40
codegen_flags: <defaults>
</compile_context>

<pallas_src>
import jax
import jax.numpy as jnp
from jax.experimental import pallas as pl
from jax.experimental.pallas import tpu as pltpu

LANE = 128


def _round_up(x: int, m: int) -> int:
    return ((x + m - 1) // m) * m


def _make_disc_kernel(n_hidden: int):
    """Kernel for concat(X,Z) -> [Linear+LeakyReLU(0.2)]*n_hidden -> Linear(1).

    Ref order: x, z, w0x, w0z, b0, (w_i, b_i) for hidden layers 1..n_hidden-1,
    w_head (1, H), b_head (1, 1), out.
    """

    def kernel(x_ref, z_ref, *refs):
        out_ref = refs[-1]
        p = refs[:-1]

        # First layer with the concat fused away.
        h = (jnp.dot(x_ref[...], p[0][...], preferred_element_type=jnp.float32)
             + jnp.dot(z_ref[...], p[1][...], preferred_element_type=jnp.float32)
             + p[2][...])
        h = jnp.maximum(h, 0.2 * h)  # LeakyReLU(0.2)

        idx = 3
        for _ in range(n_hidden - 1):
            w = p[idx][...]
            b = p[idx + 1][...]
            idx += 2
            h = jnp.dot(h, w, preferred_element_type=jnp.float32) + b
            h = jnp.maximum(h, 0.2 * h)

        # 1-wide head: VPU multiply + XLU cross-lane reduce (skip N=1 matmul).
        w_head = p[idx][...]      # (1, H)
        b_head = p[idx + 1][...]  # (1, 1)
        out = jnp.sum(h * w_head, axis=-1, keepdims=True) + b_head
        out_ref[...] = out.astype(out_ref.dtype)

    return kernel


def init_discriminator_params(key, z_dim: int, data_dim: int, ndfs: list[int]):
    """Mirror the PyTorch module: Linear.weight ~ N(0, 0.02), bias at PyTorch
    default uniform(-1/sqrt(fan_in), 1/sqrt(fan_in)).  Weights stored (in, out)."""
    dims = [data_dim + z_dim] + list(ndfs) + [1]
    params = []
    for i in range(len(dims) - 1):
        fan_in, fan_out = dims[i], dims[i + 1]
        key, kw, kb = jax.random.split(key, 3)
        w = 0.02 * jax.random.normal(kw, (fan_in, fan_out), dtype=jnp.float32)
        bound = 1.0 / (fan_in ** 0.5)
        b = jax.random.uniform(kb, (1, fan_out), dtype=jnp.float32,
                               minval=-bound, maxval=bound)
        params.append((w, b))
    return params


def pack_params_for_kernel(params, data_dim: int, z_dim: int, lane: int = LANE):
    """Split W0 for fused concat, zero-pad hidden widths to multiples of `lane`,
    and turn the (H, 1) head into a (1, H) row for the VPU-reduce head.

    The zero padding is semantically transparent: padded bias/weight columns
    produce exactly-zero activations which contribute nothing downstream.
    """
    n_layers = len(params)
    assert n_layers >= 2, "need at least one hidden layer"
    packed = []
    prev_out_pad = None
    for i, (w, b) in enumerate(params):
        fan_in, fan_out = w.shape
        is_last = (i == n_layers - 1)
        out_pad = fan_out if is_last else _round_up(fan_out, lane)
        if out_pad != fan_out:                     # pad output features (lanes)
            w = jnp.pad(w, ((0, 0), (0, out_pad - fan_out)))
            b = jnp.pad(b, ((0, 0), (0, out_pad - fan_out)))
        if i > 0 and prev_out_pad != fan_in:       # match previous padded width
            w = jnp.pad(w, ((0, prev_out_pad - fan_in), (0, 0)))
        if i == 0:
            packed += [w[:data_dim, :], w[data_dim:, :], b]   # W0x, W0z, b0
        elif is_last:
            packed += [w.T, b]                      # (1, H) row, (1, 1) bias
        else:
            packed += [w, b]
        prev_out_pad = out_pad
    return packed


@jax.jit
def discriminator_forward(X, Z, packed_params):
    """Forward pass: disc(concat([X, Z], dim=1)) — concat fused in-kernel."""
    packed_params = list(packed_params)
    batch, data_dim = X.shape
    _, z_dim = Z.shape
    n_hidden = (len(packed_params) - 3) // 2

    # Batch tile: big enough to pipeline well, small enough for v7x VMEM.
    tm = min(512, _round_up(batch, 8))
    batch_p = _round_up(batch, tm)
    if batch_p != batch:
        X = jnp.pad(X, ((0, batch_p - batch), (0, 0)))
        Z = jnp.pad(Z, ((0, batch_p - batch), (0, 0)))

    kernel = _make_disc_kernel(n_hidden)

    in_specs = [
        pl.BlockSpec((tm, data_dim), lambda i: (i, 0)),
        pl.BlockSpec((tm, z_dim), lambda i: (i, 0)),
    ]
    for prm in packed_params:  # weights/biases: constant block -> VMEM-resident
        in_specs.append(pl.BlockSpec(prm.shape, lambda i: (0, 0)))

    # Advisory cost estimate for XLA scheduling.
    flops = 0
    weight_bytes = 0
    for prm in packed_params:
        weight_bytes += int(prm.size) * prm.dtype.itemsize
        if prm.ndim == 2 and prm.shape[0] > 1:
            flops += 2 * batch_p * prm.shape[0] * prm.shape[1]
    flops += 2 * batch_p * packed_params[-2].shape[-1]  # head mul + reduce
    bytes_accessed = int(weight_bytes + 4 * (int(X.size) + int(Z.size) + batch_p))

    out = pl.pallas_call(
        kernel,
        out_shape=jax.ShapeDtypeStruct((batch_p, 1), jnp.float32),
        grid=(batch_p // tm,),
        in_specs=in_specs,
        out_specs=pl.BlockSpec((tm, 1), lambda i: (i, 0)),
        compiler_params=pltpu.CompilerParams(
            dimension_semantics=("parallel",),   # megacore sharding on v7x
            vmem_limit_bytes=32 * 1024 * 1024,   # safe on v5e/v6e/v7x
        ),
        cost_estimate=pl.CostEstimate(
            flops=int(flops), transcendentals=0, bytes_accessed=bytes_accessed),
    )(X, Z, *packed_params)
    return out[:batch]


def reference_forward(X, Z, params):
    """Pure-JAX reference on the ORIGINAL (unpadded, unsplit) parameters."""
    h = jnp.concatenate([X, Z], axis=1).astype(jnp.float32)
    for i, (w, b) in enumerate(params):
        h = h @ w + b
        if i < len(params) - 1:
            h = jnp.where(h > 0, h, 0.2 * h)
    return h


if __name__ == "__main__":
    # Small shapes consistent with Discriminator(z_dim, data_dim, ndfs).
    z_dim, data_dim = 8, 16
    ndfs = [32, 32]
    batch = 8

    key = jax.random.PRNGKey(0)
    kx, kz, kp = jax.random.split(key, 3)
    X = jax.random.normal(kx, (batch, data_dim), dtype=jnp.float32)
    Z = jax.random.normal(kz, (batch, z_dim), dtype=jnp.float32)

    params = init_discriminator_params(kp, z_dim, data_dim, ndfs)
    packed = pack_params_for_kernel(params, data_dim, z_dim)

    out = discriminator_forward(X, Z, packed)
    out = jax.block_until_ready(out)

    ref = reference_forward(X, Z, params)
    assert out.shape == (batch, 1), out.shape
    assert jnp.allclose(out, ref, atol=1e-4, rtol=1e-4), (out, ref)

    print("KERNEL_OK")
</pallas_src>

<mosaic_0001>
module attributes {stable_mosaic.version = 11 : i64} {
  func.func @kernel(%arg0: i32, %arg1: memref<8x16xf32, #tpu.memory_space<vmem>>, %arg2: memref<8x8xf32, #tpu.memory_space<vmem>>, %arg3: memref<16x128xf32, #tpu.memory_space<vmem>>, %arg4: memref<8x128xf32, #tpu.memory_space<vmem>>, %arg5: memref<1x128xf32, #tpu.memory_space<vmem>>, %arg6: memref<128x128xf32, #tpu.memory_space<vmem>>, %arg7: memref<1x128xf32, #tpu.memory_space<vmem>>, %arg8: memref<1x128xf32, #tpu.memory_space<vmem>>, %arg9: memref<1x1xf32, #tpu.memory_space<vmem>>, %arg10: memref<8x1xf32, #tpu.memory_space<vmem>>) attributes {dimension_semantics = [#tpu.dimension_semantics<parallel>], iteration_bounds = array<i64: 1>, scalar_prefetch = 0 : i64, scratch_operands = 0 : i64, tpu.core_type = #tpu.core_type<tc>, window_params = [{transform_indices = @transform_0, window_bounds = array<i64: 8, 16>}, {transform_indices = @transform_1, window_bounds = array<i64: 8, 8>}, {pipeline_mode = #tpu.pipeline_mode<synchronous>, transform_indices = @transform_2, window_bounds = array<i64: 16, 128>}, {pipeline_mode = #tpu.pipeline_mode<synchronous>, transform_indices = @transform_3, window_bounds = array<i64: 8, 128>}, {pipeline_mode = #tpu.pipeline_mode<synchronous>, transform_indices = @transform_4, window_bounds = array<i64: 1, 128>}, {pipeline_mode = #tpu.pipeline_mode<synchronous>, transform_indices = @transform_5, window_bounds = array<i64: 128, 128>}, {pipeline_mode = #tpu.pipeline_mode<synchronous>, transform_indices = @transform_6, window_bounds = array<i64: 1, 128>}, {pipeline_mode = #tpu.pipeline_mode<synchronous>, transform_indices = @transform_7, window_bounds = array<i64: 1, 128>}, {pipeline_mode = #tpu.pipeline_mode<synchronous>, transform_indices = @transform_8, window_bounds = array<i64: 1, 1>}, {transform_indices = @transform_9, window_bounds = array<i64: 8, 1>}]} {
    %c0 = arith.constant 0 : index
    %c0_0 = arith.constant 0 : index
    %0 = vector.load %arg1[%c0, %c0_0] : memref<8x16xf32, #tpu.memory_space<vmem>>, vector<8x16xf32>
    %c0_1 = arith.constant 0 : index
    %c0_2 = arith.constant 0 : index
    %1 = vector.load %arg3[%c0_1, %c0_2] : memref<16x128xf32, #tpu.memory_space<vmem>>, vector<16x128xf32>
    %cst = arith.constant dense<0.000000e+00> : vector<8x128xf32>
    %2 = tpu.matmul %0, %1, %cst {dimension_numbers = #tpu.dot_dimension_numbers<[1], [0], [0], [1], [0, 0, 1, 1], [], []>} : vector<8x16xf32>, vector<16x128xf32>, vector<8x128xf32> -> vector<8x128xf32>
    %c0_3 = arith.constant 0 : index
    %c0_4 = arith.constant 0 : index
    %3 = vector.load %arg2[%c0_3, %c0_4] : memref<8x8xf32, #tpu.memory_space<vmem>>, vector<8x8xf32>
    %c0_5 = arith.constant 0 : index
    %c0_6 = arith.constant 0 : index
    %4 = vector.load %arg4[%c0_5, %c0_6] : memref<8x128xf32, #tpu.memory_space<vmem>>, vector<8x128xf32>
    %cst_7 = arith.constant dense<0.000000e+00> : vector<8x128xf32>
    %5 = tpu.matmul %3, %4, %cst_7 {dimension_numbers = #tpu.dot_dimension_numbers<[1], [0], [0], [1], [0, 0, 1, 1], [], []>} : vector<8x8xf32>, vector<8x128xf32>, vector<8x128xf32> -> vector<8x128xf32>
    %6 = arith.addf %2, %5 : vector<8x128xf32>
    %c0_8 = arith.constant 0 : index
    %c0_9 = arith.constant 0 : index
    %7 = vector.load %arg5[%c0_8, %c0_9] : memref<1x128xf32, #tpu.memory_space<vmem>>, vector<1x128xf32>
    %8 = vector.broadcast %7 : vector<1x128xf32> to vector<8x128xf32>
    %9 = arith.addf %6, %8 : vector<8x128xf32>
    %cst_10 = arith.constant 2.000000e-01 : f32
    %10 = vector.broadcast %cst_10 : f32 to vector<8x128xf32>
    %11 = arith.mulf %10, %9 : vector<8x128xf32>
    %12 = arith.maximumf %9, %11 : vector<8x128xf32>
    %c0_11 = arith.constant 0 : index
    %c0_12 = arith.constant 0 : index
    %13 = vector.load %arg6[%c0_11, %c0_12] : memref<128x128xf32, #tpu.memory_space<vmem>>, vector<128x128xf32>
    %c0_13 = arith.constant 0 : index
    %c0_14 = arith.constant 0 : index
    %14 = vector.load %arg7[%c0_13, %c0_14] : memref<1x128xf32, #tpu.memory_space<vmem>>, vector<1x128xf32>
    %cst_15 = arith.constant dense<0.000000e+00> : vector<8x128xf32>
    %15 = tpu.matmul %12, %13, %cst_15 {dimension_numbers = #tpu.dot_dimension_numbers<[1], [0], [0], [1], [0, 0, 1, 1], [], []>} : vector<8x128xf32>, vector<128x128xf32>, vector<8x128xf32> -> vector<8x128xf32>
    %16 = vector.broadcast %14 : vector<1x128xf32> to vector<8x128xf32>
    %17 = arith.addf %15, %16 : vector<8x128xf32>
    %cst_16 = arith.constant 2.000000e-01 : f32
    %18 = vector.broadcast %cst_16 : f32 to vector<8x128xf32>
    %19 = arith.mulf %18, %17 : vector<8x128xf32>
    %20 = arith.maximumf %17, %19 : vector<8x128xf32>
    %c0_17 = arith.constant 0 : index
    %c0_18 = arith.constant 0 : index
    %21 = vector.load %arg8[%c0_17, %c0_18] : memref<1x128xf32, #tpu.memory_space<vmem>>, vector<1x128xf32>
    %c0_19 = arith.constant 0 : index
    %c0_20 = arith.constant 0 : index
    %22 = vector.load %arg9[%c0_19, %c0_20] : memref<1x1xf32, #tpu.memory_space<vmem>>, vector<1x1xf32>
    %23 = vector.broadcast %21 : vector<1x128xf32> to vector<8x128xf32>
    %24 = arith.mulf %20, %23 : vector<8x128xf32>
    %cst_21 = arith.constant dense<0.000000e+00> : vector<8xf32>
    %25 = vector.multi_reduction <add>, %24, %cst_21 [1] : vector<8x128xf32> to vector<8xf32>
    %26 = vector.shape_cast %25 : vector<8xf32> to vector<8x1xf32>
    %27 = vector.broadcast %22 : vector<1x1xf32> to vector<8x1xf32>
    %28 = arith.addf %26, %27 : vector<8x1xf32>
    %c0_22 = arith.constant 0 : index
    %c0_23 = arith.constant 0 : index
    %29 = vector.load %arg10[%c0_22, %c0_23] : memref<8x1xf32, #tpu.memory_space<vmem>>, vector<8x1xf32>
    tpu.vector_store %arg10[%c0_22, %c0_23], %28 {strides = array<i32>} : memref<8x1xf32, #tpu.memory_space<vmem>>, vector<8x1xf32>,
    return
  }
  func.func @transform_0(%arg0: i32) -> (i32, i32) {
    %c0_i32 = arith.constant 0 : i32
    %c0_i32_0 = arith.constant 0 : i32
    return %arg0, %c0_i32 : i32, i32
  }
  func.func @transform_1(%arg0: i32) -> (i32, i32) {
    %c0_i32 = arith.constant 0 : i32
    %c0_i32_0 = arith.constant 0 : i32
    return %arg0, %c0_i32 : i32, i32
  }
  func.func @transform_2(%arg0: i32) -> (i32, i32) {
    %c0_i32 = arith.constant 0 : i32
    %c0_i32_0 = arith.constant 0 : i32
    %c0_i32_1 = arith.constant 0 : i32
    return %c0_i32, %c0_i32_0 : i32, i32
  }
  func.func @transform_3(%arg0: i32) -> (i32, i32) {
    %c0_i32 = arith.constant 0 : i32
    %c0_i32_0 = arith.constant 0 : i32
    %c0_i32_1 = arith.constant 0 : i32
    return %c0_i32, %c0_i32_0 : i32, i32
  }
  func.func @transform_4(%arg0: i32) -> (i32, i32) {
    %c0_i32 = arith.constant 0 : i32
    %c0_i32_0 = arith.constant 0 : i32
    %c0_i32_1 = arith.constant 0 : i32
    return %c0_i32, %c0_i32_0 : i32, i32
  }
  func.func @transform_5(%arg0: i32) -> (i32, i32) {
    %c0_i32 = arith.constant 0 : i32
    %c0_i32_0 = arith.constant 0 : i32
    %c0_i32_1 = arith.constant 0 : i32
    return %c0_i32, %c0_i32_0 : i32, i32
  }
  func.func @transform_6(%arg0: i32) -> (i32, i32) {
    %c0_i32 = arith.constant 0 : i32
    %c0_i32_0 = arith.constant 0 : i32
    %c0_i32_1 = arith.constant 0 : i32
    return %c0_i32, %c0_i32_0 : i32, i32
  }
  func.func @transform_7(%arg0: i32) -> (i32, i32) {
    %c0_i32 = arith.constant 0 : i32
    %c0_i32_0 = arith.constant 0 : i32
    %c0_i32_1 = arith.constant 0 : i32
    return %c0_i32, %c0_i32_0 : i32, i32
  }
  func.func @transform_8(%arg0: i32) -> (i32, i32) {
    %c0_i32 = arith.constant 0 : i32
    %c0_i32_0 = arith.constant 0 : i32
    %c0_i32_1 = arith.constant 0 : i32
    return %c0_i32, %c0_i32_0 : i32, i32
  }
  func.func @transform_9(%arg0: i32) -> (i32, i32) {
    %c0_i32 = arith.constant 0 : i32
    %c0_i32_0 = arith.constant 0 : i32
    return %arg0, %c0_i32 : i32, i32
  }
}

</mosaic_0001>

<llo_original>
// kernel: discriminator_forward.1
$region0: #{discriminator_forward.1}
  #allocation0 [shape = 'u32[]', space=smem, size = 0x4, offset = 0x4, fixed_abs, tag = 'smem constant byte address 0x4 - core index']
  #allocation1 [shape = 'u32[144,128]{1,0:T(1,128)}', space=vmem, size = 0x12000, scoped, tag = 'internal scratch']
  #allocation2 [shape = 'f32[1,1]{1,0:T(1,128)S(1)}', space=vmem, size = 0x200, scoped, tag = 'scoped memory for discriminator_forward.1']
  %s0 = inlined_call_operand.hbm [shape: f32[8,16], index: 0, kind: input, shape index: {}]
  %s1 = inlined_call_operand.hbm [shape: f32[8,8], index: 1, kind: input, shape index: {}]
  %s2 = inlined_call_operand.hbm [shape: f32[16,128], index: 2, kind: input, shape index: {}]
  %s3 = inlined_call_operand.vmem [shape: f32[8,128], index: 3, kind: input, shape index: {}]
  %s4 = inlined_call_operand.vmem [shape: f32[1,128], index: 4, kind: input, shape index: {}]
  %s5 = inlined_call_operand.hbm [shape: f32[128,128], index: 5, kind: input, shape index: {}]
  %s6 = inlined_call_operand.vmem [shape: f32[1,128], index: 6, kind: input, shape index: {}]
  %s7 = inlined_call_operand.vmem [shape: f32[1,128], index: 7, kind: input, shape index: {}]
  %s8 = inlined_call_operand.<no memory space> [shape: f32[1,1], index: 8, kind: input, shape index: {}]
  %s9 = inlined_call_operand.vmem [shape: f32[8,1], index: 9, kind: output, shape index: {}]
  %s10 = sld [smem:[#allocation0]]
  $region62: #{discriminator_forward.1} parent=0
    _
  %s12 = ssub.s32 1, %s10
  %s13 = scalar_select 0, %s12, %s10
  %v14 = vstv %s8
  %15 = vst [vmem:[#allocation2] sm:$0x1] %v14
  $region1: #{discriminator_forward.1} parent=0
    #allocation3 [shape = 'u8[4096]{0}', space=vmem, size = 0x1000, scoped, tag = 'input window, operand 0, single buffered']
    #allocation4 [shape = 's32[1]{0}', space=sflag, size = 0x4, scoped, tag = 'scoped memory for discriminator_forward.1']
    #allocation5 [shape = 'u8[4096]{0}', space=vmem, size = 0x1000, scoped, tag = 'input window, operand 1, single buffered']
    #allocation6 [shape = 's32[1]{0}', space=sflag, size = 0x4, scoped, tag = 'scoped memory for discriminator_forward.1']
    #allocation7 [shape = 'u8[8192]{0}', space=vmem, size = 0x2000, scoped, tag = 'input window, operand 2, single buffered']
    #allocation8 [shape = 'u8[65536]{0}', space=vmem, size = 0x10000, scoped, tag = 'input window, operand 5, single buffered']
    #allocation9 [shape = 's32[1]{0}', space=sflag, size = 0x4, scoped, tag = 'scoped memory for discriminator_forward.1']
    %16 = vsyncpa [#allocation4], 0
    %17 = vsyncpa [#allocation6], 0
    %18 = vsyncpa [#allocation9], 0
    // Predicated region
    $region2: #{discriminator_forward.1} parent=1 // pred_check
      _
    $region3: #{discriminator_forward.1} parent=1 // pred_check_branch
      %20 = sbr.rel (0) target = $region5
    $region4: #{discriminator_forward.1} parent=1 // pred_region
      %s22 = ssub.s32 128, 128
      %23 = vsyncadd [#allocation4], %s22
      %s25 = sshll.u32 [#allocation3], 4
      %s26 = int_to_ptr.vmem [resolvable:$true] %s25
      %28 = dma.hbm_to_vmem [thread:$0]  %s0, 128, %s26, [#allocation4]
    $region5: #{discriminator_forward.1} parent=1 // pred_fallthru
      _
    // Predicated region
    $region6: #{discriminator_forward.1} parent=1 // pred_check
      _
    $region7: #{discriminator_forward.1} parent=1 // pred_check_branch
      %30 = sbr.rel (0) target = $region9
    $region8: #{discriminator_forward.1} parent=1 // pred_region
      %s32 = ssub.s32 128, 128
      %33 = vsyncadd [#allocation6], %s32
      %s35 = sshll.u32 [#allocation5], 4
      %s36 = int_to_ptr.vmem [resolvable:$true] %s35
      %38 = dma.hbm_to_vmem [thread:$0]  %s1, 128, %s36, [#allocation6]
    $region9: #{discriminator_forward.1} parent=1 // pred_fallthru
      _
    // Predicated region
    $region10: #{discriminator_forward.1} parent=1 // pred_check
      _
    $region11: #{discriminator_forward.1} parent=1 // pred_check_branch
      %40 = sbr.rel (0) target = $region13
    $region12: #{discriminator_forward.1} parent=1 // pred_region
      %s42 = ssub.s32 256, 256
      %43 = vsyncadd [#allocation6], %s42
      %s44 = sshll.u32 [#allocation7], 4
      %s45 = int_to_ptr.vmem [resolvable:$true] %s44
      %50 = dma.hbm_to_vmem [thread:$0]  %s2, 256, %s45, [#allocation6], 128, 128, 8
    $region13: #{discriminator_forward.1} parent=1 // pred_fallthru
      _
    // Predicated region
    $region14: #{discriminator_forward.1} parent=1 // pred_check
      _
    $region15: #{discriminator_forward.1} parent=1 // pred_check_branch
      %52 = sbr.rel (0) target = $region17
    $region16: #{discriminator_forward.1} parent=1 // pred_region
      _
    $region17: #{discriminator_forward.1} parent=1 // pred_fallthru
      _
    // Predicated region
    $region18: #{discriminator_forward.1} parent=1 // pred_check
      _
    $region19: #{discriminator_forward.1} parent=1 // pred_check_branch
      %54 = sbr.rel (0) target = $region21
    $region20: #{discriminator_forward.1} parent=1 // pred_region
      _
    $region21: #{discriminator_forward.1} parent=1 // pred_fallthru
      _
    // Predicated region
    $region22: #{discriminator_forward.1} parent=1 // pred_check
      _
    $region23: #{discriminator_forward.1} parent=1 // pred_check_branch
      %56 = sbr.rel (0) target = $region25
    $region24: #{discriminator_forward.1} parent=1 // pred_region
      %s58 = ssub.s32 2048, 2048
      %59 = vsyncadd [#allocation9], %s58
      %s60 = sshll.u32 [#allocation8], 4
      %s61 = int_to_ptr.vmem [resolvable:$true] %s60
      %66 = dma.hbm_to_vmem [thread:$0]  %s5, 2048, %s61, [#allocation9], 128, 128, 8
    $region25: #{discriminator_forward.1} parent=1 // pred_fallthru
      _
    // Predicated region
    $region26: #{discriminator_forward.1} parent=1 // pred_check
      _
    $region27: #{discriminator_forward.1} parent=1 // pred_check_branch
      %68 = sbr.rel (0) target = $region29
    $region28: #{discriminator_forward.1} parent=1 // pred_region
      _
    $region29: #{discriminator_forward.1} parent=1 // pred_fallthru
      _
    // Predicated region
    $region30: #{discriminator_forward.1} parent=1 // pred_check
      _
    $region31: #{discriminator_forward.1} parent=1 // pred_check_branch
      %70 = sbr.rel (0) target = $region33
    $region32: #{discriminator_forward.1} parent=1 // pred_region
      _
    $region33: #{discriminator_forward.1} parent=1 // pred_fallthru
      _
    // Predicated region
    $region34: #{discriminator_forward.1} parent=1 // pred_check
      _
    $region35: #{discriminator_forward.1} parent=1 // pred_check_branch
      %72 = sbr.rel (0) target = $region37
    $region36: #{discriminator_forward.1} parent=1 // pred_region
      _
    $region37: #{discriminator_forward.1} parent=1 // pred_fallthru
      _
    // Predicated region
    $region38: #{discriminator_forward.1} parent=1 // pred_check
      _
    $region39: #{discriminator_forward.1} parent=1 // pred_check_branch
      %74 = sbr.rel (0) target = $region41
    $region40: #{discriminator_forward.1} parent=1 // pred_region
      %75 = dma.done [#allocation4], 128
    $region41: #{discriminator_forward.1} parent=1 // pred_fallthru
      _
    // Predicated region
    $region42: #{discriminator_forward.1} parent=1 // pred_check
      _
    $region43: #{discriminator_forward.1} parent=1 // pred_check_branch
      %77 = sbr.rel (0) target = $region45
    $region44: #{discriminator_forward.1} parent=1 // pred_region
      %78 = dma.done [#allocation6], 128
    $region45: #{discriminator_forward.1} parent=1 // pred_fallthru
      _
    // Predicated region
    $region46: #{discriminator_forward.1} parent=1 // pred_check
      _
    $region47: #{discriminator_forward.1} parent=1 // pred_check_branch
      %80 = sbr.rel (0) target = $region49
    $region48: #{discriminator_forward.1} parent=1 // pred_region
      %81 = dma.done [#allocation6], 256
    $region49: #{discriminator_forward.1} parent=1 // pred_fallthru
      _
    // Predicated region
    $region50: #{discriminator_forward.1} parent=1 // pred_check
      _
    $region51: #{discriminator_forward.1} parent=1 // pred_check_branch
      %83 = sbr.rel (0) target = $region53
    $region52: #{discriminator_forward.1} parent=1 // pred_region
      %84 = dma.done [#allocation9], 2048
    $region53: #{discriminator_forward.1} parent=1 // pred_fallthru
      _
    %v85 = vld [vmem:[#allocation3] sm:$0xff]
    %v86 = vld [vmem:[#allocation7] sm:$0xff]
    %v87 = vld [vmem:[#allocation7 + $0x8] sm:$0xff]
    %v88 = vld [vmem:[#allocation5] sm:$0xff]
    %v89 = vld [vmem:[%s3] sm:$0xff]
    %vm90 = vcmask 64512
    %v92 = vsel %vm90, %v88, 0
    %94 = vmatprep.subr.mxu0 0.0
    %95 = vmatpush1.msra.mxu0 %v89
    %96 = vmatprep.subr.mxu0 0.0
    %97 = vmatpush1.msra.mxu0 0.0
    %98 = vmatprep.subr.mxu0 0.0
    %99 = vmatpush1.msra.mxu0 0.0
    %100 = vmatprep.subr.mxu0 0.0
    %101 = vmatpush1.msra.mxu0 0.0
    %102 = vmatprep.subr.mxu0 0.0
    %103 = vmatpush1.msra.mxu0 0.0
    %104 = vmatprep.subr.mxu0 0.0
    %105 = vmatpush1.msra.mxu0 0.0
    %106 = vmatprep.subr.mxu0 0.0
    %107 = vmatpush1.msra.mxu0 0.0
    %108 = vmatprep.subr.mxu0 0.0
    %109 = vmatpush1.msra.mxu0 0.0
    %110 = vmatprep.subr.mxu0 0.0
    %111 = vmatpush1.msra.mxu0 0.0
    %112 = vmatprep.subr.mxu0 0.0
    %113 = vmatpush1.msra.mxu0 0.0
    %114 = vmatprep.subr.mxu0 0.0
    %115 = vmatpush1.msra.mxu0 0.0
    %116 = vmatprep.subr.mxu0 0.0
    %117 = vmatpush1.msra.mxu0 0.0
    %118 = vmatprep.subr.mxu0 0.0
    %119 = vmatpush1.msra.mxu0 0.0
    %120 = vmatprep.subr.mxu0 0.0
    %121 = vmatpush1.msra.mxu0 0.0
    %122 = vmatprep.subr.mxu0 0.0
    %123 = vmatpush1.msra.mxu0 0.0
    %124 = vmatprep.subr.mxu0 0.0
    %125 = vmatpush1.msra.mxu0 0.0
    %126 = vmatprep.subr.mxu0 0.0
    %127 = vmatpush1.msra.mxu0 0.0
    %128 = vmatprep.subr.mxu0 0.0
    %129 = vmatpush1.msra.mxu0 0.0
    %130 = vmatprep.subr.mxu0 0.0
    %131 = vmatpush1.msra.mxu0 0.0
    %132 = vmatprep.subr.mxu0 0.0
    %133 = vmatpush1.msra.mxu0 0.0
    %134 = vmatprep.subr.mxu0 0.0
    %135 = vmatpush1.msra.mxu0 0.0
    %136 = vmatprep.subr.mxu0 0.0
    %137 = vmatpush1.msra.mxu0 0.0
    %138 = vmatprep.subr.mxu0 0.0
    %139 = vmatpush1.msra.mxu0 0.0
    %140 = vmatprep.subr.mxu0 0.0
    %141 = vmatpush1.msra.mxu0 0.0
    %142 = vmatprep.subr.mxu0 0.0
    %143 = vmatpush1.msra.mxu0 0.0
    %144 = vmatprep.subr.mxu0 0.0
    %145 = vmatpush1.msra.mxu0 0.0
    %146 = vmatprep.subr.mxu0 0.0
    %147 = vmatpush1.msra.mxu0 0.0
    %148 = vmatprep.subr.mxu0 0.0
    %149 = vmatpush1.msra.mxu0 0.0
    %150 = vmatprep.subr.mxu0 0.0
    %151 = vmatpush1.msra.mxu0 0.0
    %152 = vmatprep.subr.mxu0 0.0
    %153 = vmatpush1.msra.mxu0 0.0
    %154 = vmatprep.subr.mxu0 0.0
    %155 = vmatpush1.msra.mxu0 0.0
    %156 = vmatprep.subr.mxu0 0.0
    %157 = vmatpush1.msra.mxu0 0.0
    %158 = vmatprep.mubr.f32.mxu0 0.0
    %159 = vmatmul.mubr.f32.gmra.mrb[0].mxu0 %v92
    %v160 = vpop.f32.mrb[0].mxu0
    %v161 = vadd.f32 0.0, %v160
    %v162 = vpop.f32.mrb[0].mxu0
    %163 = vdwg.mxu0
    %vm164 = vcmask 130048
    %v166 = vsel %vm164, %v85, 0
    %168 = vmatprep.subr.mxu0 0.0
    %169 = vmatpush1.msra.mxu0 %v86
    %170 = vmatprep.subr.mxu0 0.0
    %171 = vmatpush1.msra.mxu0 %v87
    %172 = vmatprep.subr.mxu0 0.0
    %173 = vmatpush1.msra.mxu0 0.0
    %174 = vmatprep.subr.mxu0 0.0
    %175 = vmatpush1.msra.mxu0 0.0
    %176 = vmatprep.subr.mxu0 0.0
    %177 = vmatpush1.msra.mxu0 0.0
    %178 = vmatprep.subr.mxu0 0.0
    %179 = vmatpush1.msra.mxu0 0.0
    %180 = vmatprep.subr.mxu0 0.0
    %181 = vmatpush1.msra.mxu0 0.0
    %182 = vmatprep.subr.mxu0 0.0
    %183 = vmatpush1.msra.mxu0 0.0
    %184 = vmatprep.subr.mxu0 0.0
    %185 = vmatpush1.msra.mxu0 0.0
    %186 = vmatprep.subr.mxu0 0.0
    %187 = vmatpush1.msra.mxu0 0.0
    %188 = vmatprep.subr.mxu0 0.0
    %189 = vmatpush1.msra.mxu0 0.0
    %190 = vmatprep.subr.mxu0 0.0
    %191 = vmatpush1.msra.mxu0 0.0
    %192 = vmatprep.subr.mxu0 0.0
    %193 = vmatpush1.msra.mxu0 0.0
    %194 = vmatprep.subr.mxu0 0.0
    %195 = vmatpush1.msra.mxu0 0.0
    %196 = vmatprep.subr.mxu0 0.0
    %197 = vmatpush1.msra.mxu0 0.0
    %198 = vmatprep.subr.mxu0 0.0
    %199 = vmatpush1.msra.mxu0 0.0
    %200 = vmatprep.subr.mxu0 0.0
    %201 = vmatpush1.msra.mxu0 0.0
    %202 = vmatprep.subr.mxu0 0.0
    %203 = vmatpush1.msra.mxu0 0.0
    %204 = vmatprep.subr.mxu0 0.0
    %205 = vmatpush1.msra.mxu0 0.0
    %206 = vmatprep.subr.mxu0 0.0
    %207 = vmatpush1.msra.mxu0 0.0
    %208 = vmatprep.subr.mxu0 0.0
    %209 = vmatpush1.msra.mxu0 0.0
    %210 = vmatprep.subr.mxu0 0.0
    %211 = vmatpush1.msra.mxu0 0.0
    %212 = vmatprep.subr.mxu0 0.0
    %213 = vmatpush1.msra.mxu0 0.0
    %214 = vmatprep.subr.mxu0 0.0
    %215 = vmatpush1.msra.mxu0 0.0
    %216 = vmatprep.subr.mxu0 0.0
    %217 = vmatpush1.msra.mxu0 0.0
    %218 = vmatprep.subr.mxu0 0.0
    %219 = vmatpush1.msra.mxu0 0.0
    %220 = vmatprep.subr.mxu0 0.0
    %221 = vmatpush1.msra.mxu0 0.0
    %222 = vmatprep.subr.mxu0 0.0
    %223 = vmatpush1.msra.mxu0 0.0
    %224 = vmatprep.subr.mxu0 0.0
    %225 = vmatpush1.msra.mxu0 0.0
    %226 = vmatprep.subr.mxu0 0.0
    %227 = vmatpush1.msra.mxu0 0.0
    %228 = vmatprep.subr.mxu0 0.0
    %229 = vmatpush1.msra.mxu0 0.0
    %230 = vmatprep.subr.mxu0 0.0
    %231 = vmatpush1.msra.mxu0 0.0
    %232 = vmatprep.mubr.f32.mxu0 0.0
    %233 = vmatmul.mubr.f32.gmra.mrb[0].mxu0 %v166
    %v234 = vpop.f32.mrb[0].mxu0
    %v235 = vadd.f32 %v161, %v234
    %v236 = vpop.f32.mrb[0].mxu0
    %237 = vdwg.mxu0
    %v238 = vld [vmem:[%s4] sm:$0x1]
    %v240 = vlaneseq
    %v241 = vshrl.u32 %v240, 7
    %v242 = vsub.s32 0, %v241
    %v243 = vrot.slane %v238, %v242
    %v245 = vadd.f32 %v235, %v243
    %v246 = vmul.f32 %v245, 0.2
    %v247 = vmax.f32 %v245, %v246
    %v248 = vld [vmem:[#allocation8] sm:$0xff]
    %v249 = vld [vmem:[#allocation8 + $0x8] sm:$0xff]
    %v250 = vld [vmem:[#allocation8 + $0x10] sm:$0xff]
    %v251 = vld [vmem:[#allocation8 + $0x18] sm:$0xff]
    %v252 = vld [vmem:[#allocation8 + $0x20] sm:$0xff]
    %v253 = vld [vmem:[#allocation8 + $0x28] sm:$0xff]
    %v254 = vld [vmem:[#allocation8 + $0x30] sm:$0xff]
    %v255 = vld [vmem:[#allocation8 + $0x38] sm:$0xff]
    %v256 = vld [vmem:[#allocation8 + $0x40] sm:$0xff]
    %v257 = vld [vmem:[#allocation8 + $0x48] sm:$0xff]
    %v258 = vld [vmem:[#allocation8 + $0x50] sm:$0xff]
    %v259 = vld [vmem:[#allocation8 + $0x58] sm:$0xff]
    %v260 = vld [vmem:[#allocation8 + $0x60] sm:$0xff]
    %v261 = vld [vmem:[#allocation8 + $0x68] sm:$0xff]
    %v262 = vld [vmem:[#allocation8 + $0x70] sm:$0xff]
    %v263 = vld [vmem:[#allocation8 + $0x78] sm:$0xff]
    %v264 = vld [vmem:[%s6] sm:$0x1]
    %v266 = vlaneseq
    %v267 = vshrl.u32 %v266, 7
    %v268 = vsub.s32 0, %v267
    %v269 = vrot.slane %v264, %v268
    %271 = vmatprep.subr.mxu0 0.0
    %272 = vmatpush1.msra.mxu0 %v248
    %273 = vmatprep.subr.mxu0 0.0
    %274 = vmatpush1.msra.mxu0 %v249
    %275 = vmatprep.subr.mxu0 0.0
    %276 = vmatpush1.msra.mxu0 %v250
    %277 = vmatprep.subr.mxu0 0.0
    %278 = vmatpush1.msra.mxu0 %v251
    %279 = vmatprep.subr.mxu0 0.0
    %280 = vmatpush1.msra.mxu0 %v252
    %281 = vmatprep.subr.mxu0 0.0
    %282 = vmatpush1.msra.mxu0 %v253
    %283 = vmatprep.subr.mxu0 0.0
    %284 = vmatpush1.msra.mxu0 %v254
    %285 = vmatprep.subr.mxu0 0.0
    %286 = vmatpush1.msra.mxu0 %v255
    %287 = vmatprep.subr.mxu0 0.0
    %288 = vmatpush1.msra.mxu0 %v256
    %289 = vmatprep.subr.mxu0 0.0
    %290 = vmatpush1.msra.mxu0 %v257
    %291 = vmatprep.subr.mxu0 0.0
    %292 = vmatpush1.msra.mxu0 %v258
    %293 = vmatprep.subr.mxu0 0.0
    %294 = vmatpush1.msra.mxu0 %v259
    %295 = vmatprep.subr.mxu0 0.0
    %296 = vmatpush1.msra.mxu0 %v260
    %297 = vmatprep.subr.mxu0 0.0
    %298 = vmatpush1.msra.mxu0 %v261
    %299 = vmatprep.subr.mxu0 0.0
    %300 = vmatpush1.msra.mxu0 %v262
    %301 = vmatprep.subr.mxu0 0.0
    %302 = vmatpush1.msra.mxu0 %v263
    %303 = vmatprep.subr.mxu0 0.0
    %304 = vmatpush1.msra.mxu0 0.0
    %305 = vmatprep.subr.mxu0 0.0
    %306 = vmatpush1.msra.mxu0 0.0
    %307 = vmatprep.subr.mxu0 0.0
    %308 = vmatpush1.msra.mxu0 0.0
    %309 = vmatprep.subr.mxu0 0.0
    %310 = vmatpush1.msra.mxu0 0.0
    %311 = vmatprep.subr.mxu0 0.0
    %312 = vmatpush1.msra.mxu0 0.0
    %313 = vmatprep.subr.mxu0 0.0
    %314 = vmatpush1.msra.mxu0 0.0
    %315 = vmatprep.subr.mxu0 0.0
    %316 = vmatpush1.msra.mxu0 0.0
    %317 = vmatprep.subr.mxu0 0.0
    %318 = vmatpush1.msra.mxu0 0.0
    %319 = vmatprep.subr.mxu0 0.0
    %320 = vmatpush1.msra.mxu0 0.0
    %321 = vmatprep.subr.mxu0 0.0
    %322 = vmatpush1.msra.mxu0 0.0
    %323 = vmatprep.subr.mxu0 0.0
    %324 = vmatpush1.msra.mxu0 0.0
    %325 = vmatprep.subr.mxu0 0.0
    %326 = vmatpush1.msra.mxu0 0.0
    %327 = vmatprep.subr.mxu0 0.0
    %328 = vmatpush1.msra.mxu0 0.0
    %329 = vmatprep.subr.mxu0 0.0
    %330 = vmatpush1.msra.mxu0 0.0
    %331 = vmatprep.subr.mxu0 0.0
    %332 = vmatpush1.msra.mxu0 0.0
    %333 = vmatprep.subr.mxu0 0.0
    %334 = vmatpush1.msra.mxu0 0.0
    %335 = vmatprep.mubr.f32.mxu0 0.0
    %336 = vmatmul.mubr.f32.gmra.mrb[0].mxu0 %v247
    %v337 = vpop.f32.mrb[0].mxu0
    %v338 = vadd.f32 %v269, %v337
    %v339 = vpop.f32.mrb[0].mxu0
    %340 = vdwg.mxu0
    %v341 = vmul.f32 %v338, 0.2
    %v342 = vmax.f32 %v338, %v341
    %v343 = vld [vmem:[%s7] sm:$0x1]
    %v344 = vld [vmem:[#allocation2] sm:$0x1]
    %v346 = vlaneseq
    %v347 = vshrl.u32 %v346, 7
    %v348 = vsub.s32 0, %v347
    %v349 = vrot.slane %v343, %v348
    %v351 = vmul.f32 %v342, %v349
    %352 = vadd.xlane.f32.xlu0 %v351
    %v353 = vpop.xlane.xlu0 %352
    %v355 = vlaneseq
    %v356 = vshrl.u32 %v355, 7
    %v357 = vsub.s32 0, %v356
    %v358 = vrot.slane %v344, %v357
    %v360 = vadd.f32 %v353, %v358
    %vm361 = vcmask 7168
    %362 = vst.msk [vmem:[%s9] sm:$0xff] %vm361, %v360
    // Predicated region
    $region54: #{discriminator_forward.1} parent=1 // pred_check
      _
    $region55: #{discriminator_forward.1} parent=1 // pred_check_branch
      %364 = sbr.rel (0) target = $region57
    $region56: #{discriminator_forward.1} parent=1 // pred_region
      _
    $region57: #{discriminator_forward.1} parent=1 // pred_fallthru
      _
    // Predicated region
    $region58: #{discriminator_forward.1} parent=1 // pred_check
      _
    $region59: #{discriminator_forward.1} parent=1 // pred_check_branch
      %366 = sbr.rel (0) target = $region61
    $region60: #{discriminator_forward.1} parent=1 // pred_region
      _
    $region61: #{discriminator_forward.1} parent=1 // pred_fallthru
      _
    %367 = vsyncpa [#allocation4], 1
    %368 = vsyncpa [#allocation6], 1
    %369 = vsyncpa [#allocation9], 1

</llo_original>
